<compile_context>
chip_gen: v5e
topology: v5e:2x2
jax: 0.10.0
libtpu: 0.0.40
codegen_flags: <defaults>
</compile_context>

<pallas_src>
import jax
import jax.numpy as jnp
from jax.experimental import pallas as pl
from jax.experimental.pallas import tpu as pltpu

INPUT_DIM = 28 * 28      # 784
HIDDEN_DIM = 256
OUTPUT_DIM = 10

D_OUT_PAD = 128          # lane-dense output, avoids masked vst on 10-wide rows
TB_MAX = 512             # max batch-tile rows (sweet spot per mem-bound sweep)
B_ALIGN = 16             # row alignment (bf16 output sublane pack = 16)


def _round_up(n: int, m: int) -> int:
    return ((n + m - 1) // m) * m


def mlp_kernel(x_ref, w1_ref, b1_ref, w2_ref, b2_ref, o_ref):
    # fcl_ih: cast the streamed f32 x tile to bf16 on the VPU (hidden under
    # DMA), bf16 x bf16 -> f32 accumulation on the MXU.
    x_bf = x_ref[...].astype(jnp.bfloat16)
    h = jnp.dot(x_bf, w1_ref[...], preferred_element_type=jnp.float32)
    h = jnp.maximum(h + b1_ref[...], 0.0)                    # bias + ReLU in f32
    # fcl_ho: hidden cast back to bf16 for the MXU, accumulate in f32.
    out = jnp.dot(h.astype(jnp.bfloat16), w2_ref[...],
                  preferred_element_type=jnp.float32)
    o_ref[...] = (out + b2_ref[...]).astype(o_ref.dtype)     # bf16 writeback


@jax.jit
def mlp_forward(x, w1, b1, w2, b2):
    """x: (B, ...) flattened to (B, 784); w1: (784,256), w2: (256,10) in
    (in, out) layout. Returns (B, 10) f32 logits matching the PyTorch MLP."""
    B = x.shape[0]
    x2d = x.reshape(B, -1).astype(jnp.float32)      # mirrors x.view(B, -1)
    assert x2d.shape[1] == INPUT_DIM

    # Trace-time batch-tile selection (B is static under jit):
    #  - small B: one tile, rounded up to 16 rows (no wasted DMA/MXU work)
    #  - large B: <=512-row tiles and n_tiles >= 2 (dual-TC sharding on v7x)
    if B <= TB_MAX:
        n_tiles = 1
        tb = _round_up(max(B, 1), B_ALIGN)
    else:
        n_tiles = pl.cdiv(B, TB_MAX)
        tb = _round_up(pl.cdiv(B, n_tiles), B_ALIGN)
    b_pad = n_tiles * tb

    # Only row-pad (deterministic zero rows, sliced away afterwards); no
    # feature pad / dtype cast of x in the wrapper.
    if b_pad != B:
        x2d = jnp.pad(x2d, ((0, b_pad - B), (0, 0)))

    # One-time weight layout prep (folded into the surrounding jit): weights
    # to bf16, output dim zero-padded 10 -> 128 (cancels exactly / sliced off).
    w1_p = w1.astype(jnp.bfloat16)                                  # (784, 256)
    b1_p = b1.reshape(1, HIDDEN_DIM).astype(jnp.float32)            # (1, 256)
    w2_p = jnp.zeros((HIDDEN_DIM, D_OUT_PAD), jnp.bfloat16)
    w2_p = w2_p.at[:, :OUTPUT_DIM].set(w2.astype(jnp.bfloat16))     # (256, 128)
    b2_p = jnp.zeros((1, D_OUT_PAD), jnp.float32)
    b2_p = b2_p.at[0, :OUTPUT_DIM].set(b2.astype(jnp.float32))      # (1, 128)

    cost = pl.CostEstimate(
        flops=2 * b_pad * (INPUT_DIM * HIDDEN_DIM + HIDDEN_DIM * D_OUT_PAD),
        transcendentals=0,
        bytes_accessed=(b_pad * INPUT_DIM * 4          # x, f32
                        + w1_p.size * 2 + w2_p.size * 2
                        + b1_p.size * 4 + b2_p.size * 4
                        + b_pad * D_OUT_PAD * 2),      # out, bf16
    )

    out_p = pl.pallas_call(
        mlp_kernel,
        out_shape=jax.ShapeDtypeStruct((b_pad, D_OUT_PAD), jnp.bfloat16),
        grid_spec=pltpu.PrefetchScalarGridSpec(
            num_scalar_prefetch=0,
            grid=(n_tiles,),
            in_specs=[
                # x tile: last dim 784 equals the full array dim -> legal.
                pl.BlockSpec((tb, INPUT_DIM), lambda i: (i, 0)),
                pl.BlockSpec((INPUT_DIM, HIDDEN_DIM), lambda i: (0, 0)),  # w1 resident
                pl.BlockSpec((1, HIDDEN_DIM), lambda i: (0, 0)),          # b1 resident
                pl.BlockSpec((HIDDEN_DIM, D_OUT_PAD), lambda i: (0, 0)),  # w2 resident
                pl.BlockSpec((1, D_OUT_PAD), lambda i: (0, 0)),           # b2 resident
            ],
            out_specs=pl.BlockSpec((tb, D_OUT_PAD), lambda i: (i, 0)),
        ),
        compiler_params=pltpu.CompilerParams(
            dimension_semantics=("parallel",),     # dual-TC sharding on v7x
            vmem_limit_bytes=32 * 1024 * 1024,     # ample on v5e/v6e/v7x
        ),
        cost_estimate=cost,
    )(x2d, w1_p, b1_p, w2_p, b2_p)

    return out_p[:B, :OUTPUT_DIM].astype(jnp.float32)


def init_params(key, input_dim, hidden_dim, output_dim):
    """Deterministic init mimicking torch.nn.Linear (uniform +-1/sqrt(fan_in)),
    with weights stored as (in, out) for the kernel's x @ W layout."""
    k1, k2, k3, k4 = jax.random.split(key, 4)
    bound1 = 1.0 / jnp.sqrt(input_dim)
    bound2 = 1.0 / jnp.sqrt(hidden_dim)
    w1 = jax.random.uniform(k1, (input_dim, hidden_dim), jnp.float32, -bound1, bound1)
    b1 = jax.random.uniform(k2, (hidden_dim,), jnp.float32, -bound1, bound1)
    w2 = jax.random.uniform(k3, (hidden_dim, output_dim), jnp.float32, -bound2, bound2)
    b2 = jax.random.uniform(k4, (output_dim,), jnp.float32, -bound2, bound2)
    return w1, b1, w2, b2


if __name__ == "__main__":
    key = jax.random.PRNGKey(0)
    kx, kp = jax.random.split(key)

    # Small MNIST-like batch: (B, 1, 28, 28); forward flattens to (B, 784).
    x = jax.random.normal(kx, (2, 1, 28, 28), dtype=jnp.float32)
    w1, b1, w2, b2 = init_params(kp, INPUT_DIM, HIDDEN_DIM, OUTPUT_DIM)

    out = mlp_forward(x, w1, b1, w2, b2)
    jax.block_until_ready(out)

    # Reference mirroring the kernel's bf16 matmul inputs / f32 accumulation
    # and the bf16 output writeback.
    x2d = x.reshape(x.shape[0], -1)
    xb = x2d.astype(jnp.bfloat16).astype(jnp.float32)
    w1b = w1.astype(jnp.bfloat16).astype(jnp.float32)
    w2b = w2.astype(jnp.bfloat16).astype(jnp.float32)
    h = jnp.maximum(xb @ w1b + b1, 0.0)
    ref = h.astype(jnp.bfloat16).astype(jnp.float32) @ w2b + b2
    ref = ref.astype(jnp.bfloat16).astype(jnp.float32)

    assert out.shape == (2, OUTPUT_DIM)
    assert jnp.allclose(out, ref, atol=2e-2, rtol=2e-2)
    print("KERNEL_OK")
</pallas_src>

<mosaic_0001>
module attributes {stable_mosaic.version = 11 : i64} {
  func.func @mlp_kernel(%arg0: i32, %arg1: memref<16x784xf32, #tpu.memory_space<vmem>>, %arg2: memref<784x256xbf16, #tpu.memory_space<vmem>>, %arg3: memref<1x256xf32, #tpu.memory_space<vmem>>, %arg4: memref<256x128xbf16, #tpu.memory_space<vmem>>, %arg5: memref<1x128xf32, #tpu.memory_space<vmem>>, %arg6: memref<16x128xbf16, #tpu.memory_space<vmem>>) attributes {dimension_semantics = [#tpu.dimension_semantics<parallel>], iteration_bounds = array<i64: 1>, scalar_prefetch = 0 : i64, scratch_operands = 0 : i64, tpu.core_type = #tpu.core_type<tc>, window_params = [{transform_indices = @transform_0, window_bounds = array<i64: 16, 784>}, {pipeline_mode = #tpu.pipeline_mode<synchronous>, transform_indices = @transform_1, window_bounds = array<i64: 784, 256>}, {pipeline_mode = #tpu.pipeline_mode<synchronous>, transform_indices = @transform_2, window_bounds = array<i64: 1, 256>}, {pipeline_mode = #tpu.pipeline_mode<synchronous>, transform_indices = @transform_3, window_bounds = array<i64: 256, 128>}, {pipeline_mode = #tpu.pipeline_mode<synchronous>, transform_indices = @transform_4, window_bounds = array<i64: 1, 128>}, {transform_indices = @transform_5, window_bounds = array<i64: 16, 128>}]} {
    %c0 = arith.constant 0 : index
    %c0_0 = arith.constant 0 : index
    %0 = vector.load %arg1[%c0, %c0_0] : memref<16x784xf32, #tpu.memory_space<vmem>>, vector<16x784xf32>
    %1 = arith.truncf %0 : vector<16x784xf32> to vector<16x784xbf16>
    %c0_1 = arith.constant 0 : index
    %c0_2 = arith.constant 0 : index
    %2 = vector.load %arg2[%c0_1, %c0_2] : memref<784x256xbf16, #tpu.memory_space<vmem>>, vector<784x256xbf16>
    %cst = arith.constant dense<0.000000e+00> : vector<16x256xf32>
    %3 = tpu.matmul %1, %2, %cst {dimension_numbers = #tpu.dot_dimension_numbers<[1], [0], [0], [1], [0, 0, 1, 1], [], []>} : vector<16x784xbf16>, vector<784x256xbf16>, vector<16x256xf32> -> vector<16x256xf32>
    %c0_3 = arith.constant 0 : index
    %c0_4 = arith.constant 0 : index
    %4 = vector.load %arg3[%c0_3, %c0_4] : memref<1x256xf32, #tpu.memory_space<vmem>>, vector<1x256xf32>
    %5 = vector.broadcast %4 : vector<1x256xf32> to vector<16x256xf32>
    %6 = arith.addf %3, %5 : vector<16x256xf32>
    %cst_5 = arith.constant 0.000000e+00 : f32
    %7 = vector.broadcast %cst_5 : f32 to vector<16x256xf32>
    %8 = arith.maximumf %6, %7 : vector<16x256xf32>
    %9 = arith.truncf %8 : vector<16x256xf32> to vector<16x256xbf16>
    %c0_6 = arith.constant 0 : index
    %c0_7 = arith.constant 0 : index
    %10 = vector.load %arg4[%c0_6, %c0_7] : memref<256x128xbf16, #tpu.memory_space<vmem>>, vector<256x128xbf16>
    %cst_8 = arith.constant dense<0.000000e+00> : vector<16x128xf32>
    %11 = tpu.matmul %9, %10, %cst_8 {dimension_numbers = #tpu.dot_dimension_numbers<[1], [0], [0], [1], [0, 0, 1, 1], [], []>} : vector<16x256xbf16>, vector<256x128xbf16>, vector<16x128xf32> -> vector<16x128xf32>
    %c0_9 = arith.constant 0 : index
    %c0_10 = arith.constant 0 : index
    %12 = vector.load %arg5[%c0_9, %c0_10] : memref<1x128xf32, #tpu.memory_space<vmem>>, vector<1x128xf32>
    %13 = vector.broadcast %12 : vector<1x128xf32> to vector<16x128xf32>
    %14 = arith.addf %11, %13 : vector<16x128xf32>
    %15 = arith.truncf %14 : vector<16x128xf32> to vector<16x128xbf16>
    %c0_11 = arith.constant 0 : index
    %c0_12 = arith.constant 0 : index
    %16 = vector.load %arg6[%c0_11, %c0_12] : memref<16x128xbf16, #tpu.memory_space<vmem>>, vector<16x128xbf16>
    tpu.vector_store %arg6[%c0_11, %c0_12], %15 {strides = array<i32>} : memref<16x128xbf16, #tpu.memory_space<vmem>>, vector<16x128xbf16>,
    return
  }
  func.func @transform_0(%arg0: i32) -> (i32, i32) {
    %c0_i32 = arith.constant 0 : i32
    %c0_i32_0 = arith.constant 0 : i32
    return %arg0, %c0_i32 : i32, i32
  }
  func.func @transform_1(%arg0: i32) -> (i32, i32) {
    %c0_i32 = arith.constant 0 : i32
    %c0_i32_0 = arith.constant 0 : i32
    %c0_i32_1 = arith.constant 0 : i32
    return %c0_i32, %c0_i32_0 : i32, i32
  }
  func.func @transform_2(%arg0: i32) -> (i32, i32) {
    %c0_i32 = arith.constant 0 : i32
    %c0_i32_0 = arith.constant 0 : i32
    %c0_i32_1 = arith.constant 0 : i32
    return %c0_i32, %c0_i32_0 : i32, i32
  }
  func.func @transform_3(%arg0: i32) -> (i32, i32) {
    %c0_i32 = arith.constant 0 : i32
    %c0_i32_0 = arith.constant 0 : i32
    %c0_i32_1 = arith.constant 0 : i32
    return %c0_i32, %c0_i32_0 : i32, i32
  }
  func.func @transform_4(%arg0: i32) -> (i32, i32) {
    %c0_i32 = arith.constant 0 : i32
    %c0_i32_0 = arith.constant 0 : i32
    %c0_i32_1 = arith.constant 0 : i32
    return %c0_i32, %c0_i32_0 : i32, i32
  }
  func.func @transform_5(%arg0: i32) -> (i32, i32) {
    %c0_i32 = arith.constant 0 : i32
    %c0_i32_0 = arith.constant 0 : i32
    return %arg0, %c0_i32 : i32, i32
  }
}

</mosaic_0001>

<llo_original>
// kernel: mlp_forward.1
$region0: #{mlp_forward.1}
  #allocation0 [shape = 'u32[]', space=smem, size = 0x4, offset = 0x4, fixed_abs, tag = 'smem constant byte address 0x4 - core index']
  #allocation1 [shape = 'u32[72,128]{1,0:T(1,128)}', space=vmem, size = 0x9000, scoped, tag = 'internal scratch']
  %s0 = inlined_call_operand.vmem [shape: f32[16,784], index: 0, kind: input, shape index: {}]
  %s1 = inlined_call_operand.vmem [shape: bf16[784,256], index: 1, kind: input, shape index: {}]
  %s2 = inlined_call_operand.vmem [shape: f32[1,256], index: 2, kind: input, shape index: {}]
  %s3 = inlined_call_operand.vmem [shape: bf16[256,128], index: 3, kind: input, shape index: {}]
  %s4 = inlined_call_operand.vmem [shape: f32[1,128], index: 4, kind: input, shape index: {}]
  %s5 = inlined_call_operand.vmem [shape: bf16[16,128], index: 5, kind: output, shape index: {}]
  %s6 = sld [smem:[#allocation0]]
  $region30: #{mlp_forward.1} parent=0
    _
  %s8 = ssub.s32 1, %s6
  %s9 = scalar_select 0, %s8, %s6
  // Predicated region
  $region2: #{mlp_forward.1} parent=0 // pred_check
    _
  $region3: #{mlp_forward.1} parent=0 // pred_check_branch
    %11 = sbr.rel (0) target = $region5
  $region4: #{mlp_forward.1} parent=0 // pred_region
    _
  $region5: #{mlp_forward.1} parent=0 // pred_fallthru
    _
  // Predicated region
  $region6: #{mlp_forward.1} parent=0 // pred_check
    _
  $region7: #{mlp_forward.1} parent=0 // pred_check_branch
    %13 = sbr.rel (0) target = $region9
  $region8: #{mlp_forward.1} parent=0 // pred_region
    _
  $region9: #{mlp_forward.1} parent=0 // pred_fallthru
    _
  // Predicated region
  $region10: #{mlp_forward.1} parent=0 // pred_check
    _
  $region11: #{mlp_forward.1} parent=0 // pred_check_branch
    %15 = sbr.rel (0) target = $region13
  $region12: #{mlp_forward.1} parent=0 // pred_region
    _
  $region13: #{mlp_forward.1} parent=0 // pred_fallthru
    _
  // Predicated region
  $region14: #{mlp_forward.1} parent=0 // pred_check
    _
  $region15: #{mlp_forward.1} parent=0 // pred_check_branch
    %17 = sbr.rel (0) target = $region17
  $region16: #{mlp_forward.1} parent=0 // pred_region
    _
  $region17: #{mlp_forward.1} parent=0 // pred_fallthru
    _
  // Predicated region
  $region18: #{mlp_forward.1} parent=0 // pred_check
    _
  $region19: #{mlp_forward.1} parent=0 // pred_check_branch
    %19 = sbr.rel (0) target = $region21
  $region20: #{mlp_forward.1} parent=0 // pred_region
    _
  $region21: #{mlp_forward.1} parent=0 // pred_fallthru
    _
  %v21 = vld [vmem:[%s0] sm:$0xff]
  %v22 = vld [vmem:[%s0 + $0x8] sm:$0xff]
  %v23 = vld [vmem:[%s0 + $0x10] sm:$0xff]
  %v24 = vld [vmem:[%s0 + $0x18] sm:$0xff]
  %v25 = vld [vmem:[%s0 + $0x20] sm:$0xff]
  %v26 = vld [vmem:[%s0 + $0x28] sm:$0xff]
  %v27 = vld [vmem:[%s0 + $0x30] sm:$0xff]
  %v28 = vld [vmem:[%s0 + $0x38] sm:$0xff]
  %v29 = vld [vmem:[%s0 + $0x40] sm:$0xff]
  %v30 = vld [vmem:[%s0 + $0x48] sm:$0xff]
  %v31 = vld [vmem:[%s0 + $0x50] sm:$0xff]
  %v32 = vld [vmem:[%s0 + $0x58] sm:$0xff]
  %v33 = vld [vmem:[%s0 + $0x60] sm:$0xff]
  %v34 = vld [vmem:[%s0 + $0x68] sm:$0xff]
  %v35 = vpack.c.bf16 %v28, %v21
  %v36 = vpack.c.bf16 %v29, %v22
  %v37 = vpack.c.bf16 %v30, %v23
  %v38 = vpack.c.bf16 %v31, %v24
  %v39 = vpack.c.bf16 %v32, %v25
  %v40 = vpack.c.bf16 %v33, %v26
  %v41 = vpack.c.bf16 %v34, %v27
  %v42 = vld [vmem:[%s1] sm:$0xff]
  %v43 = vld [vmem:[%s1 + $0x8] sm:$0xff]
  %v44 = vld [vmem:[%s1 + $0x10] sm:$0xff]
  %v45 = vld [vmem:[%s1 + $0x18] sm:$0xff]
  %v46 = vld [vmem:[%s1 + $0x20] sm:$0xff]
  %v47 = vld [vmem:[%s1 + $0x28] sm:$0xff]
  %v48 = vld [vmem:[%s1 + $0x30] sm:$0xff]
  %v49 = vld [vmem:[%s1 + $0x38] sm:$0xff]
  %v50 = vld [vmem:[%s1 + $0x40] sm:$0xff]
  %v51 = vld [vmem:[%s1 + $0x48] sm:$0xff]
  %v52 = vld [vmem:[%s1 + $0x50] sm:$0xff]
  %v53 = vld [vmem:[%s1 + $0x58] sm:$0xff]
  %v54 = vld [vmem:[%s1 + $0x60] sm:$0xff]
  %v55 = vld [vmem:[%s1 + $0x68] sm:$0xff]
  %v56 = vld [vmem:[%s1 + $0x70] sm:$0xff]
  %v57 = vld [vmem:[%s1 + $0x78] sm:$0xff]
  %v58 = vld [vmem:[%s1 + $0x80] sm:$0xff]
  %v59 = vld [vmem:[%s1 + $0x88] sm:$0xff]
  %v60 = vld [vmem:[%s1 + $0x90] sm:$0xff]
  %v61 = vld [vmem:[%s1 + $0x98] sm:$0xff]
  %v62 = vld [vmem:[%s1 + $0xa0] sm:$0xff]
  %v63 = vld [vmem:[%s1 + $0xa8] sm:$0xff]
  %v64 = vld [vmem:[%s1 + $0xb0] sm:$0xff]
  %v65 = vld [vmem:[%s1 + $0xb8] sm:$0xff]
  %v66 = vld [vmem:[%s1 + $0xc0] sm:$0xff]
  %v67 = vld [vmem:[%s1 + $0xc8] sm:$0xff]
  %v68 = vld [vmem:[%s1 + $0xd0] sm:$0xff]
  %v69 = vld [vmem:[%s1 + $0xd8] sm:$0xff]
  %v70 = vld [vmem:[%s1 + $0xe0] sm:$0xff]
  %v71 = vld [vmem:[%s1 + $0xe8] sm:$0xff]
  %v72 = vld [vmem:[%s1 + $0xf0] sm:$0xff]
  %v73 = vld [vmem:[%s1 + $0xf8] sm:$0xff]
  %v74 = vld [vmem:[%s1 + $0x100] sm:$0xff]
  %v75 = vld [vmem:[%s1 + $0x108] sm:$0xff]
  %v76 = vld [vmem:[%s1 + $0x110] sm:$0xff]
  %v77 = vld [vmem:[%s1 + $0x118] sm:$0xff]
  %v78 = vld [vmem:[%s1 + $0x120] sm:$0xff]
  %v79 = vld [vmem:[%s1 + $0x128] sm:$0xff]
  %v80 = vld [vmem:[%s1 + $0x130] sm:$0xff]
  %v81 = vld [vmem:[%s1 + $0x138] sm:$0xff]
  %v82 = vld [vmem:[%s1 + $0x140] sm:$0xff]
  %v83 = vld [vmem:[%s1 + $0x148] sm:$0xff]
  %v84 = vld [vmem:[%s1 + $0x150] sm:$0xff]
  %v85 = vld [vmem:[%s1 + $0x158] sm:$0xff]
  %v86 = vld [vmem:[%s1 + $0x160] sm:$0xff]
  %v87 = vld [vmem:[%s1 + $0x168] sm:$0xff]
  %v88 = vld [vmem:[%s1 + $0x170] sm:$0xff]
  %v89 = vld [vmem:[%s1 + $0x178] sm:$0xff]
  %v90 = vld [vmem:[%s1 + $0x180] sm:$0xff]
  %v91 = vld [vmem:[%s1 + $0x188] sm:$0xff]
  %v92 = vld [vmem:[%s1 + $0x190] sm:$0xff]
  %v93 = vld [vmem:[%s1 + $0x198] sm:$0xff]
  %v94 = vld [vmem:[%s1 + $0x1a0] sm:$0xff]
  %v95 = vld [vmem:[%s1 + $0x1a8] sm:$0xff]
  %v96 = vld [vmem:[%s1 + $0x1b0] sm:$0xff]
  %v97 = vld [vmem:[%s1 + $0x1b8] sm:$0xff]
  %v98 = vld [vmem:[%s1 + $0x1c0] sm:$0xff]
  %v99 = vld [vmem:[%s1 + $0x1c8] sm:$0xff]
  %v100 = vld [vmem:[%s1 + $0x1d0] sm:$0xff]
  %v101 = vld [vmem:[%s1 + $0x1d8] sm:$0xff]
  %v102 = vld [vmem:[%s1 + $0x1e0] sm:$0xff]
  %v103 = vld [vmem:[%s1 + $0x1e8] sm:$0xff]
  %v104 = vld [vmem:[%s1 + $0x1f0] sm:$0xff]
  %v105 = vld [vmem:[%s1 + $0x1f8] sm:$0xff]
  %v106 = vld [vmem:[%s1 + $0x200] sm:$0xff]
  %v107 = vld [vmem:[%s1 + $0x208] sm:$0xff]
  %v108 = vld [vmem:[%s1 + $0x210] sm:$0xff]
  %v109 = vld [vmem:[%s1 + $0x218] sm:$0xff]
  %v110 = vld [vmem:[%s1 + $0x220] sm:$0xff]
  %v111 = vld [vmem:[%s1 + $0x228] sm:$0xff]
  %v112 = vld [vmem:[%s1 + $0x230] sm:$0xff]
  %v113 = vld [vmem:[%s1 + $0x238] sm:$0xff]
  %v114 = vld [vmem:[%s1 + $0x240] sm:$0xff]
  %v115 = vld [vmem:[%s1 + $0x248] sm:$0xff]
  %v116 = vld [vmem:[%s1 + $0x250] sm:$0xff]
  %v117 = vld [vmem:[%s1 + $0x258] sm:$0xff]
  %v118 = vld [vmem:[%s1 + $0x260] sm:$0xff]
  %v119 = vld [vmem:[%s1 + $0x268] sm:$0xff]
  %v120 = vld [vmem:[%s1 + $0x270] sm:$0xff]
  %v121 = vld [vmem:[%s1 + $0x278] sm:$0xff]
  %v122 = vld [vmem:[%s1 + $0x280] sm:$0xff]
  %v123 = vld [vmem:[%s1 + $0x288] sm:$0xff]
  %v124 = vld [vmem:[%s1 + $0x290] sm:$0xff]
  %v125 = vld [vmem:[%s1 + $0x298] sm:$0xff]
  %v126 = vld [vmem:[%s1 + $0x2a0] sm:$0xff]
  %v127 = vld [vmem:[%s1 + $0x2a8] sm:$0xff]
  %v128 = vld [vmem:[%s1 + $0x2b0] sm:$0xff]
  %v129 = vld [vmem:[%s1 + $0x2b8] sm:$0xff]
  %v130 = vld [vmem:[%s1 + $0x2c0] sm:$0xff]
  %v131 = vld [vmem:[%s1 + $0x2c8] sm:$0xff]
  %v132 = vld [vmem:[%s1 + $0x2d0] sm:$0xff]
  %v133 = vld [vmem:[%s1 + $0x2d8] sm:$0xff]
  %v134 = vld [vmem:[%s1 + $0x2e0] sm:$0xff]
  %v135 = vld [vmem:[%s1 + $0x2e8] sm:$0xff]
  %v136 = vld [vmem:[%s1 + $0x2f0] sm:$0xff]
  %v137 = vld [vmem:[%s1 + $0x2f8] sm:$0xff]
  %v138 = vld [vmem:[%s1 + $0x300] sm:$0xff]
  %v139 = vld [vmem:[%s1 + $0x308] sm:$0xff]
  %v140 = vld [vmem:[%s2] sm:$0x3]
  %v142 = vperm.slane %v140, 0
  %v143 = vperm.slane %v140, 1
  %v244 = vunpack.c.l.b16 %v42
  %v245 = vunpack.c.h.b16 %v42
  %v246 = vunpack.c.l.b16 %v43
  %v247 = vunpack.c.h.b16 %v43
  %v248 = vunpack.c.l.b16 %v44
  %v249 = vunpack.c.h.b16 %v44
  %v250 = vunpack.c.l.b16 %v45
  %v251 = vunpack.c.h.b16 %v45
  %v252 = vunpack.c.l.b16 %v46
  %v253 = vunpack.c.h.b16 %v46
  %v254 = vunpack.c.l.b16 %v47
  %v255 = vunpack.c.h.b16 %v47
  %v256 = vunpack.c.l.b16 %v48
  %v257 = vunpack.c.h.b16 %v48
  %v258 = vunpack.c.l.b16 %v49
  %v259 = vunpack.c.h.b16 %v49
  %v260 = vunpack.c.l.b16 %v50
  %v261 = vunpack.c.h.b16 %v50
  %v262 = vunpack.c.l.b16 %v51
  %v263 = vunpack.c.h.b16 %v51
  %v264 = vunpack.c.l.b16 %v52
  %v265 = vunpack.c.h.b16 %v52
  %v266 = vunpack.c.l.b16 %v53
  %v267 = vunpack.c.h.b16 %v53
  %v268 = vunpack.c.l.b16 %v54
  %v269 = vunpack.c.h.b16 %v54
  %v270 = vunpack.c.l.b16 %v55
  %v271 = vunpack.c.h.b16 %v55
  %v272 = vunpack.c.l.b16 %v56
  %v273 = vunpack.c.h.b16 %v56
  %v274 = vunpack.c.l.b16 %v57
  %v275 = vunpack.c.h.b16 %v57
  %v276 = vunpack.c.l.b16 %v58
  %v277 = vunpack.c.h.b16 %v58
  %v278 = vunpack.c.l.b16 %v59
  %v279 = vunpack.c.h.b16 %v59
  %v280 = vunpack.c.l.b16 %v60
  %v281 = vunpack.c.h.b16 %v60
  %v282 = vunpack.c.l.b16 %v61
  %v283 = vunpack.c.h.b16 %v61
  %v284 = vunpack.c.l.b16 %v62
  %v285 = vunpack.c.h.b16 %v62
  %v286 = vunpack.c.l.b16 %v63
  %v287 = vunpack.c.h.b16 %v63
  %v288 = vunpack.c.l.b16 %v64
  %v289 = vunpack.c.h.b16 %v64
  %v290 = vunpack.c.l.b16 %v65
  %v291 = vunpack.c.h.b16 %v65
  %v292 = vunpack.c.l.b16 %v66
  %v293 = vunpack.c.h.b16 %v66
  %v294 = vunpack.c.l.b16 %v67
  %v295 = vunpack.c.h.b16 %v67
  %v296 = vunpack.c.l.b16 %v68
  %v297 = vunpack.c.h.b16 %v68
  %v298 = vunpack.c.l.b16 %v69
  %v299 = vunpack.c.h.b16 %v69
  %v300 = vunpack.c.l.b16 %v70
  %v301 = vunpack.c.h.b16 %v70
  %v302 = vunpack.c.l.b16 %v71
  %v303 = vunpack.c.h.b16 %v71
  %v304 = vunpack.c.l.b16 %v72
  %v305 = vunpack.c.h.b16 %v72
  %v306 = vunpack.c.l.b16 %v73
  %v307 = vunpack.c.h.b16 %v73
  %v308 = vunpack.c.l.b16 %v74
  %v309 = vunpack.c.h.b16 %v74
  %v310 = vunpack.c.l.b16 %v75
  %v311 = vunpack.c.h.b16 %v75
  %v312 = vunpack.c.l.b16 %v76
  %v313 = vunpack.c.h.b16 %v76
  %v314 = vunpack.c.l.b16 %v77
  %v315 = vunpack.c.h.b16 %v77
  %v316 = vunpack.c.l.b16 %v78
  %v317 = vunpack.c.h.b16 %v78
  %v318 = vunpack.c.l.b16 %v79
  %v319 = vunpack.c.h.b16 %v79
  %v320 = vunpack.c.l.b16 %v80
  %v321 = vunpack.c.h.b16 %v80
  %v322 = vunpack.c.l.b16 %v81
  %v323 = vunpack.c.h.b16 %v81
  %v324 = vunpack.c.l.b16 %v82
  %v325 = vunpack.c.h.b16 %v82
  %v326 = vunpack.c.l.b16 %v83
  %v327 = vunpack.c.h.b16 %v83
  %v328 = vunpack.c.l.b16 %v84
  %v329 = vunpack.c.h.b16 %v84
  %v330 = vunpack.c.l.b16 %v85
  %v331 = vunpack.c.h.b16 %v85
  %v332 = vunpack.c.l.b16 %v86
  %v333 = vunpack.c.h.b16 %v86
  %v334 = vunpack.c.l.b16 %v87
  %v335 = vunpack.c.h.b16 %v87
  %v336 = vunpack.c.l.b16 %v88
  %v337 = vunpack.c.h.b16 %v88
  %v338 = vunpack.c.l.b16 %v89
  %v339 = vunpack.c.h.b16 %v89
  %v340 = vunpack.c.l.b16 %v90
  %v341 = vunpack.c.h.b16 %v90
  %v342 = vunpack.c.l.b16 %v91
  %v343 = vunpack.c.h.b16 %v91
  %v344 = vunpack.c.l.b16 %v92
  %v345 = vunpack.c.h.b16 %v92
  %v346 = vunpack.c.l.b16 %v93
  %v347 = vunpack.c.h.b16 %v93
  %v348 = vunpack.c.l.b16 %v94
  %v349 = vunpack.c.h.b16 %v94
  %v350 = vunpack.c.l.b16 %v95
  %v351 = vunpack.c.h.b16 %v95
  %v352 = vunpack.c.l.b16 %v96
  %v353 = vunpack.c.h.b16 %v96
  %v354 = vunpack.c.l.b16 %v97
  %v355 = vunpack.c.h.b16 %v97
  %v356 = vunpack.c.l.b16 %v98
  %v357 = vunpack.c.h.b16 %v98
  %v358 = vunpack.c.l.b16 %v99
  %v359 = vunpack.c.h.b16 %v99
  %v360 = vunpack.c.l.b16 %v100
  %v361 = vunpack.c.h.b16 %v100
  %v362 = vunpack.c.l.b16 %v101
  %v363 = vunpack.c.h.b16 %v101
  %v364 = vunpack.c.l.b16 %v102
  %v365 = vunpack.c.h.b16 %v102
  %v366 = vunpack.c.l.b16 %v103
  %v367 = vunpack.c.h.b16 %v103
  %v368 = vunpack.c.l.b16 %v104
  %v369 = vunpack.c.h.b16 %v104
  %v370 = vunpack.c.l.b16 %v105
  %v371 = vunpack.c.h.b16 %v105
  %v372 = vunpack.c.l.b16 %v106
  %v373 = vunpack.c.h.b16 %v106
  %v374 = vunpack.c.l.b16 %v107
  %v375 = vunpack.c.h.b16 %v107
  %v376 = vunpack.c.l.b16 %v108
  %v377 = vunpack.c.h.b16 %v108
  %v378 = vunpack.c.l.b16 %v109
  %v379 = vunpack.c.h.b16 %v109
  %v380 = vunpack.c.l.b16 %v110
  %v381 = vunpack.c.h.b16 %v110
  %v382 = vunpack.c.l.b16 %v111
  %v383 = vunpack.c.h.b16 %v111
  %v384 = vunpack.c.l.b16 %v112
  %v385 = vunpack.c.h.b16 %v112
  %v386 = vunpack.c.l.b16 %v113
  %v387 = vunpack.c.h.b16 %v113
  %v388 = vunpack.c.l.b16 %v114
  %v389 = vunpack.c.h.b16 %v114
  %v390 = vunpack.c.l.b16 %v115
  %v391 = vunpack.c.h.b16 %v115
  %v392 = vunpack.c.l.b16 %v116
  %v393 = vunpack.c.h.b16 %v116
  %v394 = vunpack.c.l.b16 %v117
  %v395 = vunpack.c.h.b16 %v117
  %v396 = vunpack.c.l.b16 %v118
  %v397 = vunpack.c.h.b16 %v118
  %v398 = vunpack.c.l.b16 %v119
  %v399 = vunpack.c.h.b16 %v119
  %v400 = vunpack.c.l.b16 %v120
  %v401 = vunpack.c.h.b16 %v120
  %v402 = vunpack.c.l.b16 %v121
  %v403 = vunpack.c.h.b16 %v121
  %v404 = vunpack.c.l.b16 %v122
  %v405 = vunpack.c.h.b16 %v122
  %v406 = vunpack.c.l.b16 %v123
  %v407 = vunpack.c.h.b16 %v123
  %v408 = vunpack.c.l.b16 %v124
  %v409 = vunpack.c.h.b16 %v124
  %v410 = vunpack.c.l.b16 %v125
  %v411 = vunpack.c.h.b16 %v125
  %v412 = vunpack.c.l.b16 %v126
  %v413 = vunpack.c.h.b16 %v126
  %v414 = vunpack.c.l.b16 %v127
  %v415 = vunpack.c.h.b16 %v127
  %v416 = vunpack.c.l.b16 %v128
  %v417 = vunpack.c.h.b16 %v128
  %v418 = vunpack.c.l.b16 %v129
  %v419 = vunpack.c.h.b16 %v129
  %v420 = vunpack.c.l.b16 %v130
  %v421 = vunpack.c.h.b16 %v130
  %v422 = vunpack.c.l.b16 %v131
  %v423 = vunpack.c.h.b16 %v131
  %v424 = vunpack.c.l.b16 %v132
  %v425 = vunpack.c.h.b16 %v132
  %v426 = vunpack.c.l.b16 %v133
  %v427 = vunpack.c.h.b16 %v133
  %v428 = vunpack.c.l.b16 %v134
  %v429 = vunpack.c.h.b16 %v134
  %v430 = vunpack.c.l.b16 %v135
  %v431 = vunpack.c.h.b16 %v135
  %v432 = vunpack.c.l.b16 %v136
  %v433 = vunpack.c.h.b16 %v136
  %v434 = vunpack.c.l.b16 %v137
  %v435 = vunpack.c.h.b16 %v137
  %v436 = vunpack.c.l.b16 %v138
  %v437 = vunpack.c.h.b16 %v138
  %v438 = vunpack.c.l.b16 %v139
  %v439 = vunpack.c.h.b16 %v139
  %v440 = vpack.c.b16 %v246, %v244
  %v441 = vpack.c.b16 %v247, %v245
  %v442 = vpack.c.b16 %v250, %v248
  %v443 = vpack.c.b16 %v251, %v249
  %v444 = vpack.c.b16 %v254, %v252
  %v445 = vpack.c.b16 %v255, %v253
  %v446 = vpack.c.b16 %v258, %v256
  %v447 = vpack.c.b16 %v259, %v257
  %v448 = vpack.c.b16 %v262, %v260
  %v449 = vpack.c.b16 %v263, %v261
  %v450 = vpack.c.b16 %v266, %v264
  %v451 = vpack.c.b16 %v267, %v265
  %v452 = vpack.c.b16 %v270, %v268
  %v453 = vpack.c.b16 %v271, %v269
  %v454 = vpack.c.b16 %v274, %v272
  %v455 = vpack.c.b16 %v275, %v273
  %v456 = vpack.c.b16 %v278, %v276
  %v457 = vpack.c.b16 %v279, %v277
  %v458 = vpack.c.b16 %v282, %v280
  %v459 = vpack.c.b16 %v283, %v281
  %v460 = vpack.c.b16 %v286, %v284
  %v461 = vpack.c.b16 %v287, %v285
  %v462 = vpack.c.b16 %v290, %v288
  %v463 = vpack.c.b16 %v291, %v289
  %v464 = vpack.c.b16 %v294, %v292
  %v465 = vpack.c.b16 %v295, %v293
  %v466 = vpack.c.b16 %v298, %v296
  %v467 = vpack.c.b16 %v299, %v297
  %v468 = vpack.c.b16 %v302, %v300
  %v469 = vpack.c.b16 %v303, %v301
  %v470 = vpack.c.b16 %v306, %v304
  %v471 = vpack.c.b16 %v307, %v305
  %v472 = vpack.c.b16 %v310, %v308
  %v473 = vpack.c.b16 %v311, %v309
  %v474 = vpack.c.b16 %v314, %v312
  %v475 = vpack.c.b16 %v315, %v313
  %v476 = vpack.c.b16 %v318, %v316
  %v477 = vpack.c.b16 %v319, %v317
  %v478 = vpack.c.b16 %v322, %v320
  %v479 = vpack.c.b16 %v323, %v321
  %v480 = vpack.c.b16 %v326, %v324
  %v481 = vpack.c.b16 %v327, %v325
  %v482 = vpack.c.b16 %v330, %v328
  %v483 = vpack.c.b16 %v331, %v329
  %v484 = vpack.c.b16 %v334, %v332
  %v485 = vpack.c.b16 %v335, %v333
  %v486 = vpack.c.b16 %v338, %v336
  %v487 = vpack.c.b16 %v339, %v337
  %v488 = vpack.c.b16 %v342, %v340
  %v489 = vpack.c.b16 %v343, %v341
  %v490 = vpack.c.b16 %v346, %v344
  %v491 = vpack.c.b16 %v347, %v345
  %v492 = vpack.c.b16 %v350, %v348
  %v493 = vpack.c.b16 %v351, %v349
  %v494 = vpack.c.b16 %v354, %v352
  %v495 = vpack.c.b16 %v355, %v353
  %v496 = vpack.c.b16 %v358, %v356
  %v497 = vpack.c.b16 %v359, %v357
  %v498 = vpack.c.b16 %v362, %v360
  %v499 = vpack.c.b16 %v363, %v361
  %v500 = vpack.c.b16 %v366, %v364
  %v501 = vpack.c.b16 %v367, %v365
  %v502 = vpack.c.b16 %v370, %v368
  %v503 = vpack.c.b16 %v371, %v369
  %v504 = vpack.c.b16 %v374, %v372
  %v505 = vpack.c.b16 %v375, %v373
  %v506 = vpack.c.b16 %v378, %v376
  %v507 = vpack.c.b16 %v379, %v377
  %v508 = vpack.c.b16 %v382, %v380
  %v509 = vpack.c.b16 %v383, %v381
  %v510 = vpack.c.b16 %v386, %v384
  %v511 = vpack.c.b16 %v387, %v385
  %v512 = vpack.c.b16 %v390, %v388
  %v513 = vpack.c.b16 %v391, %v389
  %v514 = vpack.c.b16 %v394, %v392
  %v515 = vpack.c.b16 %v395, %v393
  %v516 = vpack.c.b16 %v398, %v396
  %v517 = vpack.c.b16 %v399, %v397
  %v518 = vpack.c.b16 %v402, %v400
  %v519 = vpack.c.b16 %v403, %v401
  %v520 = vpack.c.b16 %v406, %v404
  %v521 = vpack.c.b16 %v407, %v405
  %v522 = vpack.c.b16 %v410, %v408
  %v523 = vpack.c.b16 %v411, %v409
  %v524 = vpack.c.b16 %v414, %v412
  %v525 = vpack.c.b16 %v415, %v413
  %v526 = vpack.c.b16 %v418, %v416
  %v527 = vpack.c.b16 %v419, %v417
  %v528 = vpack.c.b16 %v422, %v420
  %v529 = vpack.c.b16 %v423, %v421
  %v530 = vpack.c.b16 %v426, %v424
  %v531 = vpack.c.b16 %v427, %v425
  %v532 = vpack.c.b16 %v430, %v428
  %v533 = vpack.c.b16 %v431, %v429
  %v534 = vpack.c.b16 %v434, %v432
  %v535 = vpack.c.b16 %v435, %v433
  %v536 = vpack.c.b16 %v438, %v436
  %v537 = vpack.c.b16 %v439, %v437
  %vm636 = vcmask 130048
  %v638 = vsel %vm636, %v41, 0
  %640 = vmatpush.bf16.msra.mxu0 %v454
  %641 = vmatpush.bf16.msra.mxu0 %v452
  %642 = vmatpush.bf16.msra.mxu0 %v450
  %643 = vmatpush.bf16.msra.mxu0 %v448
  %644 = vmatpush.bf16.msra.mxu0 %v446
  %645 = vmatpush.bf16.msra.mxu0 %v444
  %646 = vmatpush.bf16.msra.mxu0 %v442
  %647 = vmatpush.bf16.msra.mxu0 %v440
  %648 = vmatmul.bf16.gmra.mxu0 %v35
  %v649 = vpop.f32.mrf.mxu0
  %v650 = vadd.f32 %v142, %v649
  %v651 = vpop.f32.mrf.mxu0
  %v652 = vadd.f32 %v142, %v651
  %653 = vdwg.mxu0
  %654 = vmatpush.bf16.msra.mxu0 %v470
  %655 = vmatpush.bf16.msra.mxu0 %v468
  %656 = vmatpush.bf16.msra.mxu0 %v466
  %657 = vmatpush.bf16.msra.mxu0 %v464
  %658 = vmatpush.bf16.msra.mxu0 %v462
  %659 = vmatpush.bf16.msra.mxu0 %v460
  %660 = vmatpush.bf16.msra.mxu0 %v458
  %661 = vmatpush.bf16.msra.mxu0 %v456
  %662 = vmatmul.bf16.gmra.mxu0 %v36
  %v663 = vpop.f32.mrf.mxu0
  %v664 = vadd.f32 %v650, %v663
  %v665 = vpop.f32.mrf.mxu0
  %v666 = vadd.f32 %v652, %v665
  %667 = vdwg.mxu0
  %668 = vmatpush.bf16.msra.mxu0 %v486
  %669 = vmatpush.bf16.msra.mxu0 %v484
  %670 = vmatpush.bf16.msra.mxu0 %v482
  %671 = vmatpush.bf16.msra.mxu0 %v480
  %672 = vmatpush.bf16.msra.mxu0 %v478
  %673 = vmatpush.bf16.msra.mxu0 %v476
  %674 = vmatpush.bf16.msra.mxu0 %v474
  %675 = vmatpush.bf16.msra.mxu0 %v472
  %676 = vmatmul.bf16.gmra.mxu0 %v37
  %v677 = vpop.f32.mrf.mxu0
  %v678 = vadd.f32 %v664, %v677
  %v679 = vpop.f32.mrf.mxu0
  %v680 = vadd.f32 %v666, %v679
  %681 = vdwg.mxu0
  %682 = vmatpush.bf16.msra.mxu0 %v502
  %683 = vmatpush.bf16.msra.mxu0 %v500
  %684 = vmatpush.bf16.msra.mxu0 %v498
  %685 = vmatpush.bf16.msra.mxu0 %v496
  %686 = vmatpush.bf16.msra.mxu0 %v494
  %687 = vmatpush.bf16.msra.mxu0 %v492
  %688 = vmatpush.bf16.msra.mxu0 %v490
  %689 = vmatpush.bf16.msra.mxu0 %v488
  %690 = vmatmul.bf16.gmra.mxu0 %v38
  %v691 = vpop.f32.mrf.mxu0
  %v692 = vadd.f32 %v678, %v691
  %v693 = vpop.f32.mrf.mxu0
  %v694 = vadd.f32 %v680, %v693
  %695 = vdwg.mxu0
  %696 = vmatpush.bf16.msra.mxu0 %v518
  %697 = vmatpush.bf16.msra.mxu0 %v516
  %698 = vmatpush.bf16.msra.mxu0 %v514
  %699 = vmatpush.bf16.msra.mxu0 %v512
  %700 = vmatpush.bf16.msra.mxu0 %v510
  %701 = vmatpush.bf16.msra.mxu0 %v508
  %702 = vmatpush.bf16.msra.mxu0 %v506
  %703 = vmatpush.bf16.msra.mxu0 %v504
  %704 = vmatmul.bf16.gmra.mxu0 %v39
  %v705 = vpop.f32.mrf.mxu0
  %v706 = vadd.f32 %v692, %v705
  %v707 = vpop.f32.mrf.mxu0
  %v708 = vadd.f32 %v694, %v707
  %709 = vdwg.mxu0
  %710 = vmatpush.bf16.msra.mxu0 %v534
  %711 = vmatpush.bf16.msra.mxu0 %v532
  %712 = vmatpush.bf16.msra.mxu0 %v530
  %713 = vmatpush.bf16.msra.mxu0 %v528
  %714 = vmatpush.bf16.msra.mxu0 %v526
  %715 = vmatpush.bf16.msra.mxu0 %v524
  %716 = vmatpush.bf16.msra.mxu0 %v522
  %717 = vmatpush.bf16.msra.mxu0 %v520
  %718 = vmatmul.bf16.gmra.mxu0 %v40
  %v719 = vpop.f32.mrf.mxu0
  %v720 = vadd.f32 %v706, %v719
  %v721 = vpop.f32.mrf.mxu0
  %v722 = vadd.f32 %v708, %v721
  %723 = vdwg.mxu0
  %724 = vmatpush.bf16.msra.mxu0 0
  %725 = vmatpush.bf16.msra.mxu0 0
  %726 = vmatpush.bf16.msra.mxu0 0
  %727 = vmatpush.bf16.msra.mxu0 0
  %728 = vmatpush.bf16.msra.mxu0 0
  %729 = vmatpush.bf16.msra.mxu0 0
  %730 = vmatpush.bf16.msra.mxu0 0
  %731 = vmatpush.bf16.msra.mxu0 %v536
  %732 = vmatmul.bf16.gmra.mxu0 %v638
  %v733 = vpop.f32.mrf.mxu0
  %v734 = vadd.f32 %v720, %v733
  %v735 = vpop.f32.mrf.mxu0
  %v736 = vadd.f32 %v722, %v735
  %737 = vdwg.mxu0
  %738 = vmatpush.bf16.msra.mxu0 %v455
  %739 = vmatpush.bf16.msra.mxu0 %v453
  %740 = vmatpush.bf16.msra.mxu0 %v451
  %741 = vmatpush.bf16.msra.mxu0 %v449
  %742 = vmatpush.bf16.msra.mxu0 %v447
  %743 = vmatpush.bf16.msra.mxu0 %v445
  %744 = vmatpush.bf16.msra.mxu0 %v443
  %745 = vmatpush.bf16.msra.mxu0 %v441
  %746 = vmatmul.bf16.gmra.mxu0 %v35
  %v747 = vpop.f32.mrf.mxu0
  %v748 = vadd.f32 %v143, %v747
  %v749 = vpop.f32.mrf.mxu0
  %v750 = vadd.f32 %v143, %v749
  %751 = vdwg.mxu0
  %752 = vmatpush.bf16.msra.mxu0 %v471
  %753 = vmatpush.bf16.msra.mxu0 %v469
  %754 = vmatpush.bf16.msra.mxu0 %v467
  %755 = vmatpush.bf16.msra.mxu0 %v465
  %756 = vmatpush.bf16.msra.mxu0 %v463
  %757 = vmatpush.bf16.msra.mxu0 %v461
  %758 = vmatpush.bf16.msra.mxu0 %v459
  %759 = vmatpush.bf16.msra.mxu0 %v457
  %760 = vmatmul.bf16.gmra.mxu0 %v36
  %v761 = vpop.f32.mrf.mxu0
  %v762 = vadd.f32 %v748, %v761
  %v763 = vpop.f32.mrf.mxu0
  %v764 = vadd.f32 %v750, %v763
  %765 = vdwg.mxu0
  %766 = vmatpush.bf16.msra.mxu0 %v487
  %767 = vmatpush.bf16.msra.mxu0 %v485
  %768 = vmatpush.bf16.msra.mxu0 %v483
  %769 = vmatpush.bf16.msra.mxu0 %v481
  %770 = vmatpush.bf16.msra.mxu0 %v479
  %771 = vmatpush.bf16.msra.mxu0 %v477
  %772 = vmatpush.bf16.msra.mxu0 %v475
  %773 = vmatpush.bf16.msra.mxu0 %v473
  %774 = vmatmul.bf16.gmra.mxu0 %v37
  %v775 = vpop.f32.mrf.mxu0
  %v776 = vadd.f32 %v762, %v775
  %v777 = vpop.f32.mrf.mxu0
  %v778 = vadd.f32 %v764, %v777
  %779 = vdwg.mxu0
  %780 = vmatpush.bf16.msra.mxu0 %v503
  %781 = vmatpush.bf16.msra.mxu0 %v501
  %782 = vmatpush.bf16.msra.mxu0 %v499
  %783 = vmatpush.bf16.msra.mxu0 %v497
  %784 = vmatpush.bf16.msra.mxu0 %v495
  %785 = vmatpush.bf16.msra.mxu0 %v493
  %786 = vmatpush.bf16.msra.mxu0 %v491
  %787 = vmatpush.bf16.msra.mxu0 %v489
  %788 = vmatmul.bf16.gmra.mxu0 %v38
  %v789 = vpop.f32.mrf.mxu0
  %v790 = vadd.f32 %v776, %v789
  %v791 = vpop.f32.mrf.mxu0
  %v792 = vadd.f32 %v778, %v791
  %793 = vdwg.mxu0
  %794 = vmatpush.bf16.msra.mxu0 %v519
  %795 = vmatpush.bf16.msra.mxu0 %v517
  %796 = vmatpush.bf16.msra.mxu0 %v515
  %797 = vmatpush.bf16.msra.mxu0 %v513
  %798 = vmatpush.bf16.msra.mxu0 %v511
  %799 = vmatpush.bf16.msra.mxu0 %v509
  %800 = vmatpush.bf16.msra.mxu0 %v507
  %801 = vmatpush.bf16.msra.mxu0 %v505
  %802 = vmatmul.bf16.gmra.mxu0 %v39
  %v803 = vpop.f32.mrf.mxu0
  %v804 = vadd.f32 %v790, %v803
  %v805 = vpop.f32.mrf.mxu0
  %v806 = vadd.f32 %v792, %v805
  %807 = vdwg.mxu0
  %808 = vmatpush.bf16.msra.mxu0 %v535
  %809 = vmatpush.bf16.msra.mxu0 %v533
  %810 = vmatpush.bf16.msra.mxu0 %v531
  %811 = vmatpush.bf16.msra.mxu0 %v529
  %812 = vmatpush.bf16.msra.mxu0 %v527
  %813 = vmatpush.bf16.msra.mxu0 %v525
  %814 = vmatpush.bf16.msra.mxu0 %v523
  %815 = vmatpush.bf16.msra.mxu0 %v521
  %816 = vmatmul.bf16.gmra.mxu0 %v40
  %v817 = vpop.f32.mrf.mxu0
  %v818 = vadd.f32 %v804, %v817
  %v819 = vpop.f32.mrf.mxu0
  %v820 = vadd.f32 %v806, %v819
  %821 = vdwg.mxu0
  %822 = vmatpush.bf16.msra.mxu0 0
  %823 = vmatpush.bf16.msra.mxu0 0
  %824 = vmatpush.bf16.msra.mxu0 0
  %825 = vmatpush.bf16.msra.mxu0 0
  %826 = vmatpush.bf16.msra.mxu0 0
  %827 = vmatpush.bf16.msra.mxu0 0
  %828 = vmatpush.bf16.msra.mxu0 0
  %829 = vmatpush.bf16.msra.mxu0 %v537
  %830 = vmatmul.bf16.gmra.mxu0 %v638
  %v831 = vpop.f32.mrf.mxu0
  %v832 = vadd.f32 %v818, %v831
  %v833 = vpop.f32.mrf.mxu0
  %v834 = vadd.f32 %v820, %v833
  %835 = vdwg.mxu0
  %v836 = vmax.f32 %v734, 0.0
  %v837 = vmax.f32 %v832, 0.0
  %v838 = vmax.f32 %v736, 0.0
  %v839 = vmax.f32 %v834, 0.0
  %v840 = vpack.c.bf16 %v838, %v836
  %v841 = vpack.c.bf16 %v839, %v837
  %v842 = vld [vmem:[%s3] sm:$0xf]
  %v843 = vld [vmem:[%s3 + $0x4] sm:$0xf]
  %v844 = vld [vmem:[%s3 + $0x8] sm:$0xf]
  %v845 = vld [vmem:[%s3 + $0xc] sm:$0xf]
  %v846 = vld [vmem:[%s3 + $0x10] sm:$0xf]
  %v847 = vld [vmem:[%s3 + $0x14] sm:$0xf]
  %v848 = vld [vmem:[%s3 + $0x18] sm:$0xf]
  %v849 = vld [vmem:[%s3 + $0x1c] sm:$0xf]
  %v850 = vld [vmem:[%s3 + $0x20] sm:$0xf]
  %v851 = vld [vmem:[%s3 + $0x24] sm:$0xf]
  %v852 = vld [vmem:[%s3 + $0x28] sm:$0xf]
  %v853 = vld [vmem:[%s3 + $0x2c] sm:$0xf]
  %v854 = vld [vmem:[%s3 + $0x30] sm:$0xf]
  %v855 = vld [vmem:[%s3 + $0x34] sm:$0xf]
  %v856 = vld [vmem:[%s3 + $0x38] sm:$0xf]
  %v857 = vld [vmem:[%s3 + $0x3c] sm:$0xf]
  %v858 = vld [vmem:[%s3 + $0x40] sm:$0xf]
  %v859 = vld [vmem:[%s3 + $0x44] sm:$0xf]
  %v860 = vld [vmem:[%s3 + $0x48] sm:$0xf]
  %v861 = vld [vmem:[%s3 + $0x4c] sm:$0xf]
  %v862 = vld [vmem:[%s3 + $0x50] sm:$0xf]
  %v863 = vld [vmem:[%s3 + $0x54] sm:$0xf]
  %v864 = vld [vmem:[%s3 + $0x58] sm:$0xf]
  %v865 = vld [vmem:[%s3 + $0x5c] sm:$0xf]
  %v866 = vld [vmem:[%s3 + $0x60] sm:$0xf]
  %v867 = vld [vmem:[%s3 + $0x64] sm:$0xf]
  %v868 = vld [vmem:[%s3 + $0x68] sm:$0xf]
  %v869 = vld [vmem:[%s3 + $0x6c] sm:$0xf]
  %v870 = vld [vmem:[%s3 + $0x70] sm:$0xf]
  %v871 = vld [vmem:[%s3 + $0x74] sm:$0xf]
  %v872 = vld [vmem:[%s3 + $0x78] sm:$0xf]
  %v873 = vld [vmem:[%s3 + $0x7c] sm:$0xf]
  %v874 = vld [vmem:[%s4] sm:$0x1]
  %v876 = vperm.slane %v874, 0
  %v910 = vunpack.c.l.b16 %v842
  %v911 = vunpack.c.l.b16 %v843
  %v912 = vunpack.c.l.b16 %v844
  %v913 = vunpack.c.l.b16 %v845
  %v914 = vunpack.c.l.b16 %v846
  %v915 = vunpack.c.l.b16 %v847
  %v916 = vunpack.c.l.b16 %v848
  %v917 = vunpack.c.l.b16 %v849
  %v918 = vunpack.c.l.b16 %v850
  %v919 = vunpack.c.l.b16 %v851
  %v920 = vunpack.c.l.b16 %v852
  %v921 = vunpack.c.l.b16 %v853
  %v922 = vunpack.c.l.b16 %v854
  %v923 = vunpack.c.l.b16 %v855
  %v924 = vunpack.c.l.b16 %v856
  %v925 = vunpack.c.l.b16 %v857
  %v926 = vunpack.c.l.b16 %v858
  %v927 = vunpack.c.l.b16 %v859
  %v928 = vunpack.c.l.b16 %v860
  %v929 = vunpack.c.l.b16 %v861
  %v930 = vunpack.c.l.b16 %v862
  %v931 = vunpack.c.l.b16 %v863
  %v932 = vunpack.c.l.b16 %v864
  %v933 = vunpack.c.l.b16 %v865
  %v934 = vunpack.c.l.b16 %v866
  %v935 = vunpack.c.l.b16 %v867
  %v936 = vunpack.c.l.b16 %v868
  %v937 = vunpack.c.l.b16 %v869
  %v938 = vunpack.c.l.b16 %v870
  %v939 = vunpack.c.l.b16 %v871
  %v940 = vunpack.c.l.b16 %v872
  %v941 = vunpack.c.l.b16 %v873
  %v942 = vpack.c.b16 %v911, %v910
  %v943 = vpack.c.b16 %v913, %v912
  %v944 = vpack.c.b16 %v915, %v914
  %v945 = vpack.c.b16 %v917, %v916
  %v946 = vpack.c.b16 %v919, %v918
  %v947 = vpack.c.b16 %v921, %v920
  %v948 = vpack.c.b16 %v923, %v922
  %v949 = vpack.c.b16 %v925, %v924
  %v950 = vpack.c.b16 %v927, %v926
  %v951 = vpack.c.b16 %v929, %v928
  %v952 = vpack.c.b16 %v931, %v930
  %v953 = vpack.c.b16 %v933, %v932
  %v954 = vpack.c.b16 %v935, %v934
  %v955 = vpack.c.b16 %v937, %v936
  %v956 = vpack.c.b16 %v939, %v938
  %v957 = vpack.c.b16 %v941, %v940
  %974 = vmatpush.bf16.msra.mxu0 %v949
  %975 = vmatpush.bf16.msra.mxu0 %v948
  %976 = vmatpush.bf16.msra.mxu0 %v947
  %977 = vmatpush.bf16.msra.mxu0 %v946
  %978 = vmatpush.bf16.msra.mxu0 %v945
  %979 = vmatpush.bf16.msra.mxu0 %v944
  %980 = vmatpush.bf16.msra.mxu0 %v943
  %981 = vmatpush.bf16.msra.mxu0 %v942
  %982 = vmatmul.bf16.gmra.mxu0 %v840
  %v983 = vpop.f32.mrf.mxu0
  %v984 = vadd.f32 %v876, %v983
  %v985 = vpop.f32.mrf.mxu0
  %v986 = vadd.f32 %v876, %v985
  %987 = vdwg.mxu0
  %988 = vmatpush.bf16.msra.mxu0 %v957
  %989 = vmatpush.bf16.msra.mxu0 %v956
  %990 = vmatpush.bf16.msra.mxu0 %v955
  %991 = vmatpush.bf16.msra.mxu0 %v954
  %992 = vmatpush.bf16.msra.mxu0 %v953
  %993 = vmatpush.bf16.msra.mxu0 %v952
  %994 = vmatpush.bf16.msra.mxu0 %v951
  %995 = vmatpush.bf16.msra.mxu0 %v950
  %996 = vmatmul.bf16.gmra.mxu0 %v841
  %v997 = vpop.f32.mrf.mxu0
  %v998 = vadd.f32 %v984, %v997
  %v999 = vpop.f32.mrf.mxu0
  %v1000 = vadd.f32 %v986, %v999
  %1001 = vdwg.mxu0
  %v1002 = vpack.c.bf16 %v998, %v998
  %v1003 = vpack.c.bf16 %v1000, %v1000
  %1004 = vst [vmem:[%s5] sm:$0xf] %v1002
  %1005 = vst [vmem:[%s5 + $0x4] sm:$0xf] %v1003
  // Predicated region
  $region22: #{mlp_forward.1} parent=0 // pred_check
    _
  $region23: #{mlp_forward.1} parent=0 // pred_check_branch
    %1007 = sbr.rel (0) target = $region25
  $region24: #{mlp_forward.1} parent=0 // pred_region
    _
  $region25: #{mlp_forward.1} parent=0 // pred_fallthru
    _
  // Predicated region
  $region26: #{mlp_forward.1} parent=0 // pred_check
    _
  $region27: #{mlp_forward.1} parent=0 // pred_check_branch
    %1009 = sbr.rel (0) target = $region29
  $region28: #{mlp_forward.1} parent=0 // pred_region
    _
  $region29: #{mlp_forward.1} parent=0 // pred_fallthru
    _

</llo_original>
